<compile_context>
chip_gen: v6e
topology: v6e:2x2x1
jax: 0.10.0
libtpu: 0.0.40
codegen_flags: <defaults>
</compile_context>

<pallas_src>
import functools

import jax
import jax.numpy as jnp
from jax.experimental import pallas as pl
from jax.experimental.pallas import tpu as pltpu


def _round_up(n: int, m: int) -> int:
    return ((n + m - 1) // m) * m


def _dirichlet_kernel(x_ref, w_ref, b_ref, o_ref):
    # x_ref: (tb, K)   w_ref: (K, N)   b_ref: (1, N)   o_ref: (tb, N)
    # MXU matmul with f32 accumulation regardless of operand dtype.
    z = jnp.dot(x_ref[...], w_ref[...], preferred_element_type=jnp.float32)
    z = z + b_ref[...]  # bias is f32; broadcast over the batch tile
    # Numerically stable softplus in f32: max(z,0) + log1p(exp(-|z|)).
    # exp/log1p land on the EUP slot and hide under the DMA wait.
    sp = jnp.maximum(z, 0.0) + jnp.log1p(jnp.exp(-jnp.abs(z)))
    o_ref[...] = (sp + 1.0).astype(o_ref.dtype)


@functools.partial(jax.jit, static_argnames=("tb", "matmul_dtype"))
def dirichlet_forward(x, w, b, *, tb=4096, matmul_dtype=None):
    """alpha = softplus(x @ w + b) + 1 computed in a single Pallas TPU kernel.

    x: (B, in_features)      -- any B; ragged last block handled by Pallas.
    w: (in_features, out_units)   (transpose of PyTorch Linear.weight)
    b: (out_units,) or (1, out_units)
    tb: max rows per grid step (amortizes per-step pipeline overhead).
    matmul_dtype: optional dtype for the MXU operands (e.g. jnp.bfloat16).
        Off by default: for f32 callers the wrapper-side cast of x costs more
        HBM traffic than it saves.  Accumulation and the softplus/bias epilogue
        are always f32.
    """
    B, K = x.shape
    Kw, N = w.shape
    assert Kw == K, "weight must be pre-transposed to (in_features, out_units)"
    b = b.reshape(1, N)
    out_dtype = x.dtype  # output keeps the caller's dtype even on the MXU fast path

    # --- Optional (opt-in) low-precision MXU operands -------------------------
    if matmul_dtype is not None:
        if x.dtype != matmul_dtype:
            x = x.astype(matmul_dtype)  # note: standalone XLA pass over x
        w = w.astype(matmul_dtype)      # tiny & resident: cast is negligible
    b_f32 = b.astype(jnp.float32)

    x_itemsize = jnp.dtype(x.dtype).itemsize
    w_itemsize = jnp.dtype(w.dtype).itemsize
    o_itemsize = jnp.dtype(out_dtype).itemsize

    # --- Batch tiling ----------------------------------------------------------
    if B <= 8:
        # Full-array block (legal: equals the array dim); nothing to split.
        tb_eff = B
    else:
        # >= 2 grid steps whenever possible so v7x's two TensorCores both work;
        # capped at tb for big batches; always a multiple of 8 (sublane tiling).
        tb_eff = max(8, min(tb, _round_up(pl.cdiv(B, 2), 8)))
        # Keep double-buffered x/out blocks (+ resident w/b) under ~12 MiB so the
        # same wrapper still compiles at v5e's 16 MiB default scoped VMEM when
        # reused with larger in_features / out_units.
        resident = 2 * (K * N * w_itemsize + N * 4)
        budget = 12 * 1024 * 1024
        while tb_eff > 8 and (2 * tb_eff * (K * x_itemsize + N * o_itemsize) + resident) > budget:
            tb_eff = max(8, _round_up(tb_eff // 2, 8))

    grid = (pl.cdiv(B, tb_eff),)

    cost = pl.CostEstimate(
        flops=2 * B * K * N,
        transcendentals=2 * B * N,  # exp + log1p per output element
        bytes_accessed=int(
            B * K * x_itemsize          # x streamed once
            + K * N * w_itemsize + N * 4  # resident weight + bias
            + B * N * o_itemsize        # unpadded output write
        ),
    )

    return pl.pallas_call(
        _dirichlet_kernel,
        out_shape=jax.ShapeDtypeStruct((B, N), out_dtype),
        grid_spec=pltpu.PrefetchScalarGridSpec(
            num_scalar_prefetch=0,
            grid=grid,
            in_specs=[
                # x streams by batch tile; w and b have constant index maps so
                # they stay resident across grid steps (no re-DMA per step).
                pl.BlockSpec((tb_eff, K), lambda i: (i, 0)),
                pl.BlockSpec((K, N), lambda i: (0, 0)),
                pl.BlockSpec((1, N), lambda i: (0, 0)),
            ],
            out_specs=pl.BlockSpec((tb_eff, N), lambda i: (i, 0)),
        ),
        compiler_params=pltpu.CompilerParams(
            # Parallel batch axis: lets v7x shard grid steps across both TCs.
            dimension_semantics=("parallel",),
        ),
        cost_estimate=cost,
    )(x, w, b_f32)


if __name__ == "__main__":
    # Small shapes consistent with the module: Linear(in_features=32, out_units=16)
    batch, in_features, out_units = 16, 32, 16

    key = jax.random.PRNGKey(0)
    kx, kw, kb = jax.random.split(key, 3)

    x = jax.random.normal(kx, (batch, in_features), dtype=jnp.float32)
    bound = 1.0 / (in_features ** 0.5)
    # PyTorch stores weight as [out, in]; we keep the transposed [in, out] layout.
    w = jax.random.uniform(kw, (in_features, out_units), jnp.float32,
                           minval=-bound, maxval=bound)
    b = jax.random.uniform(kb, (1, out_units), jnp.float32,
                           minval=-bound, maxval=bound)

    ref = jax.nn.softplus(x @ w + b) + 1.0

    # 1) Default f32 path (exact, no wrapper-side cast/pad/slice passes).
    alpha = dirichlet_forward(x, w, b)
    jax.block_until_ready(alpha)
    assert alpha.shape == (batch, out_units)
    assert jnp.allclose(alpha, ref, atol=1e-5, rtol=1e-5)
    assert bool(jnp.all(alpha > 1.0))  # Dirichlet concentrations are > 1

    # 2) Ragged batch: no batch pad in the wrapper, partial last block in-kernel.
    x2 = jax.random.normal(kx, (20, in_features), dtype=jnp.float32)
    alpha2 = dirichlet_forward(x2, w, b)
    jax.block_until_ready(alpha2)
    ref2 = jax.nn.softplus(x2 @ w + b) + 1.0
    assert alpha2.shape == (20, out_units)
    assert jnp.allclose(alpha2, ref2, atol=1e-5, rtol=1e-5)

    # 3) Tiny batch (single full-array block).
    x3 = jax.random.normal(kx, (3, in_features), dtype=jnp.float32)
    alpha3 = dirichlet_forward(x3, w, b)
    jax.block_until_ready(alpha3)
    ref3 = jax.nn.softplus(x3 @ w + b) + 1.0
    assert alpha3.shape == (3, out_units)
    assert jnp.allclose(alpha3, ref3, atol=1e-5, rtol=1e-5)

    # 4) Opt-in bf16 MXU operands (f32 accumulation + f32 epilogue) -> loose tol.
    alpha_bf = dirichlet_forward(x, w, b, matmul_dtype=jnp.bfloat16)
    jax.block_until_ready(alpha_bf)
    assert alpha_bf.shape == (batch, out_units)
    assert jnp.allclose(alpha_bf, ref, atol=2e-2, rtol=2e-2)
    assert bool(jnp.all(alpha_bf > 1.0))

    print("KERNEL_OK")
</pallas_src>

<mosaic_0001>
module attributes {stable_mosaic.version = 11 : i64} {
  func.func @_dirichlet_kernel(%arg0: i32, %arg1: memref<8x32xf32, #tpu.memory_space<vmem>>, %arg2: memref<32x16xf32, #tpu.memory_space<vmem>>, %arg3: memref<1x16xf32, #tpu.memory_space<vmem>>, %arg4: memref<8x16xf32, #tpu.memory_space<vmem>>) attributes {dimension_semantics = [#tpu.dimension_semantics<parallel>], iteration_bounds = array<i64: 2>, scalar_prefetch = 0 : i64, scratch_operands = 0 : i64, tpu.core_type = #tpu.core_type<tc>, window_params = [{transform_indices = @transform_0, window_bounds = array<i64: 8, 32>}, {pipeline_mode = #tpu.pipeline_mode<synchronous>, transform_indices = @transform_1, window_bounds = array<i64: 32, 16>}, {pipeline_mode = #tpu.pipeline_mode<synchronous>, transform_indices = @transform_2, window_bounds = array<i64: 1, 16>}, {transform_indices = @transform_3, window_bounds = array<i64: 8, 16>}]} {
    %c0 = arith.constant 0 : index
    %c0_0 = arith.constant 0 : index
    %0 = vector.load %arg1[%c0, %c0_0] : memref<8x32xf32, #tpu.memory_space<vmem>>, vector<8x32xf32>
    %c0_1 = arith.constant 0 : index
    %c0_2 = arith.constant 0 : index
    %1 = vector.load %arg2[%c0_1, %c0_2] : memref<32x16xf32, #tpu.memory_space<vmem>>, vector<32x16xf32>
    %cst = arith.constant dense<0.000000e+00> : vector<8x16xf32>
    %2 = tpu.matmul %0, %1, %cst {dimension_numbers = #tpu.dot_dimension_numbers<[1], [0], [0], [1], [0, 0, 1, 1], [], []>} : vector<8x32xf32>, vector<32x16xf32>, vector<8x16xf32> -> vector<8x16xf32>
    %c0_3 = arith.constant 0 : index
    %c0_4 = arith.constant 0 : index
    %3 = vector.load %arg3[%c0_3, %c0_4] : memref<1x16xf32, #tpu.memory_space<vmem>>, vector<1x16xf32>
    %4 = vector.broadcast %3 : vector<1x16xf32> to vector<8x16xf32>
    %5 = arith.addf %2, %4 : vector<8x16xf32>
    %cst_5 = arith.constant 0.000000e+00 : f32
    %6 = vector.broadcast %cst_5 : f32 to vector<8x16xf32>
    %7 = arith.maximumf %5, %6 : vector<8x16xf32>
    %8 = math.absf %5 : vector<8x16xf32>
    %cst_6 = arith.constant 0.000000e+00 : f32
    %9 = vector.broadcast %cst_6 : f32 to vector<8x16xf32>
    %10 = arith.subf %9, %8 : vector<8x16xf32>
    %11 = math.exp %10 : vector<8x16xf32>
    %12 = math.log1p %11 : vector<8x16xf32>
    %13 = arith.addf %7, %12 : vector<8x16xf32>
    %cst_7 = arith.constant 1.000000e+00 : f32
    %14 = vector.broadcast %cst_7 : f32 to vector<8x16xf32>
    %15 = arith.addf %13, %14 : vector<8x16xf32>
    %c0_8 = arith.constant 0 : index
    %c0_9 = arith.constant 0 : index
    %16 = vector.load %arg4[%c0_8, %c0_9] : memref<8x16xf32, #tpu.memory_space<vmem>>, vector<8x16xf32>
    tpu.vector_store %arg4[%c0_8, %c0_9], %15 {strides = array<i32>} : memref<8x16xf32, #tpu.memory_space<vmem>>, vector<8x16xf32>,
    return
  }
  func.func @transform_0(%arg0: i32) -> (i32, i32) {
    %c0_i32 = arith.constant 0 : i32
    %c0_i32_0 = arith.constant 0 : i32
    return %arg0, %c0_i32 : i32, i32
  }
  func.func @transform_1(%arg0: i32) -> (i32, i32) {
    %c0_i32 = arith.constant 0 : i32
    %c0_i32_0 = arith.constant 0 : i32
    %c0_i32_1 = arith.constant 0 : i32
    return %c0_i32, %c0_i32_0 : i32, i32
  }
  func.func @transform_2(%arg0: i32) -> (i32, i32) {
    %c0_i32 = arith.constant 0 : i32
    %c0_i32_0 = arith.constant 0 : i32
    %c0_i32_1 = arith.constant 0 : i32
    return %c0_i32, %c0_i32_0 : i32, i32
  }
  func.func @transform_3(%arg0: i32) -> (i32, i32) {
    %c0_i32 = arith.constant 0 : i32
    %c0_i32_0 = arith.constant 0 : i32
    return %arg0, %c0_i32 : i32, i32
  }
}

</mosaic_0001>

<llo_original>
// kernel: dirichlet_forward.1
$region0: #{dirichlet_forward.1}
  #allocation0 [shape = 'u32[]', space=smem, size = 0x4, offset = 0x4, fixed_abs, tag = 'smem constant byte address 0x4 - core index']
  #allocation1 [shape = 'u32[144,128]{1,0:T(1,128)}', space=vmem, size = 0x12000, scoped, tag = 'internal scratch']
  %s0 = inlined_call_operand.vmem [shape: f32[16,32], index: 0, kind: input, shape index: {}]
  %s1 = inlined_call_operand.vmem [shape: f32[32,16], index: 1, kind: input, shape index: {}]
  %s2 = inlined_call_operand.vmem [shape: f32[1,16], index: 2, kind: input, shape index: {}]
  %s3 = inlined_call_operand.hbm [shape: f32[16,16], index: 3, kind: output, shape index: {}]
  %s4 = sld [smem:[#allocation0]]
  $region45: #{dirichlet_forward.1} parent=0
    _
  %s6 = ssub.s32 1, %s4
  %s7 = scalar_select 0, %s6, %s4
  $region1: #{dirichlet_forward.1} parent=0
    #allocation2 [shape = 'u8[8192]{0}', space=vmem, size = 0x2000, scoped, tag = 'output window, operand 0']
    #allocation3 [shape = 's32[2]{0}', space=sflag, size = 0x8, scoped, tag = 'scoped memory for dirichlet_forward.1']
    %8 = vsyncpa [#allocation3], 0
    %s9 = scalar_lea.sflag [#allocation3], 1
    %10 = vsyncpa %s9, 0
    loop: start=0, step=1, limit=4
    $region2: #{dirichlet_forward.1} parent=1 // loop_pre_header
      _
    $region3: #{dirichlet_forward.1} parent=1 // loop_header
      %s12 = sphi 0, %s16
      %p13 = scmp.ge.s32.totalorder %s12, 4
      %s22 = sphi 0, %s24
      %s25 = sphi 0, %s22
      %s26 = sphi 0, %s25
      %s42 = sphi 0, %s26
      %s46 = sphi 0, %s46
      %s48 = sphi 0, %s46
      %s49 = sphi 0, %s48
      %s63 = sphi 0, %s49
      %s67 = sphi 0, %s67
      %s69 = sphi 0, %s67
      %s70 = sphi 0, %s69
      %s84 = sphi 0, %s70
      %s90 = sphi 0, %s92
      %s93 = sphi 0, %s90
      %s94 = sphi 0, %s93
      %s110 = sphi 0, %s94
    $region4: #{dirichlet_forward.1} parent=1 // loop_header_branch
      %15 = sbr.rel (%p13) target = $region8
    $region5: #{dirichlet_forward.1} parent=1 // loop_body
      %s17 = ssub.s32 %s12, 1
      %s18 = ssub.s32 %s12, 2
      %s19 = sadd.s32 %s12, 1
      %s20 = ssub.s32 %s12, %s19
      %p21 = scmp.eq.s32.totalorder %s20, 0
      %s23 = sadd.s32 %s22, 1
      %s24 = scalar_select %p21, %s22, %s23
      %p27 = pneg %p21
      %p28 = scmp.eq.s32.totalorder %s12, 1
      %p29 = por %p27, %p28
      %p30 = scmp.ne.s32.totalorder %s22, %s25
      %p31 = scmp.eq.s32.totalorder %s12, 0
      %p32 = por %p30, %p31
      %p33 = scmp.ne.s32.totalorder %s22, %s25
      %p34 = scmp.eq.s32.totalorder %s17, 1
      %p35 = por %p33, %p34
      %p36 = scmp.ne.s32.totalorder %s25, %s26
      %p37 = scmp.eq.s32.totalorder %s17, 0
      %p38 = por %p36, %p37
      %p39 = scmp.ne.s32.totalorder %s25, %s26
      %p40 = scmp.eq.s32.totalorder %s18, 1
      %p41 = por %p39, %p40
      %p43 = scmp.ne.s32.totalorder %s26, %s42
      %p44 = scmp.eq.s32.totalorder %s18, 0
      %p45 = por %p43, %p44
      %s47 = sadd.s32 %s46, 1
      %p50 = scmp.eq.s32.totalorder %s12, 1
      %p51 = scmp.ne.s32.totalorder %s46, %s48
      %p52 = scmp.eq.s32.totalorder %s12, 0
      %p53 = por %p51, %p52
      %p54 = scmp.ne.s32.totalorder %s46, %s48
      %p55 = scmp.eq.s32.totalorder %s17, 1
      %p56 = por %p54, %p55
      %p57 = scmp.ne.s32.totalorder %s48, %s49
      %p58 = scmp.eq.s32.totalorder %s17, 0
      %p59 = por %p57, %p58
      %p60 = scmp.ne.s32.totalorder %s48, %s49
      %p61 = scmp.eq.s32.totalorder %s18, 1
      %p62 = por %p60, %p61
      %p64 = scmp.ne.s32.totalorder %s49, %s63
      %p65 = scmp.eq.s32.totalorder %s18, 0
      %p66 = por %p64, %p65
      %s68 = sadd.s32 %s67, 1
      %p71 = scmp.eq.s32.totalorder %s12, 1
      %p72 = scmp.ne.s32.totalorder %s67, %s69
      %p73 = scmp.eq.s32.totalorder %s12, 0
      %p74 = por %p72, %p73
      %p75 = scmp.ne.s32.totalorder %s67, %s69
      %p76 = scmp.eq.s32.totalorder %s17, 1
      %p77 = por %p75, %p76
      %p78 = scmp.ne.s32.totalorder %s69, %s70
      %p79 = scmp.eq.s32.totalorder %s17, 0
      %p80 = por %p78, %p79
      %p81 = scmp.ne.s32.totalorder %s69, %s70
      %p82 = scmp.eq.s32.totalorder %s18, 1
      %p83 = por %p81, %p82
      %p85 = scmp.ne.s32.totalorder %s70, %s84
      %p86 = scmp.eq.s32.totalorder %s18, 0
      %p87 = por %p85, %p86
      %s88 = ssub.s32 %s12, %s19
      %p89 = scmp.eq.s32.totalorder %s88, 0
      %s91 = sadd.s32 %s90, 1
      %s92 = scalar_select %p89, %s90, %s91
      %p95 = pneg %p89
      %p96 = scmp.eq.s32.totalorder %s12, 1
      %p97 = por %p95, %p96
      %p98 = scmp.ne.s32.totalorder %s90, %s93
      %p99 = scmp.eq.s32.totalorder %s12, 0
      %p100 = por %p98, %p99
      %p101 = scmp.ne.s32.totalorder %s90, %s93
      %p102 = scmp.eq.s32.totalorder %s17, 1
      %p103 = por %p101, %p102
      %p104 = scmp.ne.s32.totalorder %s93, %s94
      %p105 = scmp.eq.s32.totalorder %s17, 0
      %p106 = por %p104, %p105
      %p107 = scmp.ne.s32.totalorder %s93, %s94
      %p108 = scmp.eq.s32.totalorder %s18, 1
      %p109 = por %p107, %p108
      %p111 = scmp.ne.s32.totalorder %s94, %s110
      %p112 = scmp.eq.s32.totalorder %s18, 0
      %p113 = por %p111, %p112
      %p114 = scmp.le.s32.totalorder 1, %s12
      %p115 = scmp.lt.s32.totalorder %s12, 3
      %p116 = pnand %p114, %p115
      %p117 = pneg %p116
      // Predicated region
      $region9: #{dirichlet_forward.1} parent=5 // pred_check
        _
      $region10: #{dirichlet_forward.1} parent=5 // pred_check_branch
        %119 = sbr.rel (%p116) target = $region12
      $region11: #{dirichlet_forward.1} parent=5 // pred_region
        %s120 = ssub.s32 %s12, 1
        // Predicated region
        $region13: #{dirichlet_forward.1} parent=11 // pred_check
          %p121 = pneg %p59
        $region14: #{dirichlet_forward.1} parent=11 // pred_check_branch
          %123 = sbr.rel (%p121) target = $region16
        $region15: #{dirichlet_forward.1} parent=11 // pred_region
          _
        $region16: #{dirichlet_forward.1} parent=11 // pred_fallthru
          _
        // Predicated region
        $region17: #{dirichlet_forward.1} parent=11 // pred_check
          %p124 = pneg %p80
        $region18: #{dirichlet_forward.1} parent=11 // pred_check_branch
          %126 = sbr.rel (%p124) target = $region20
        $region19: #{dirichlet_forward.1} parent=11 // pred_region
          _
        $region20: #{dirichlet_forward.1} parent=11 // pred_fallthru
          _
      $region12: #{dirichlet_forward.1} parent=5 // pred_fallthru
        _
      %p127 = scmp.lt.s32.totalorder %s12, 2
      // Predicated region
      $region21: #{dirichlet_forward.1} parent=5 // pred_check
        %p128 = pneg %p127
      $region22: #{dirichlet_forward.1} parent=5 // pred_check_branch
        %130 = sbr.rel (%p128) target = $region24
      $region23: #{dirichlet_forward.1} parent=5 // pred_region
        // Predicated region
        $region25: #{dirichlet_forward.1} parent=23 // pred_check
          %p131 = pneg %p32
        $region26: #{dirichlet_forward.1} parent=23 // pred_check_branch
          %133 = sbr.rel (%p131) target = $region28
        $region27: #{dirichlet_forward.1} parent=23 // pred_region
          %p134 = scmp.lt.s32.totalorder %s12, 1
          %s135 = scalar_select %p134, %s12, 1
          %s136 = smul.addr %s135, 8
          %s137 = scalar_lea.vmem %s0, %s136
        $region28: #{dirichlet_forward.1} parent=23 // pred_fallthru
          _
      $region24: #{dirichlet_forward.1} parent=5 // pred_fallthru
        _
      %p138 = scmp.le.s32.totalorder 1, %s12
      %p139 = scmp.lt.s32.totalorder %s12, 3
      %p140 = pnand %p138, %p139
      %p141 = pneg %p140
      // Predicated region
      $region29: #{dirichlet_forward.1} parent=5 // pred_check
        _
      $region30: #{dirichlet_forward.1} parent=5 // pred_check_branch
        %143 = sbr.rel (%p140) target = $region32
      $region31: #{dirichlet_forward.1} parent=5 // pred_region
        %s144 = ssub.s32 %s12, 1
        %p145 = scmp.lt.s32.totalorder %s17, 1
        %s146 = scalar_select %p145, %s17, 1
        %s147 = smul.addr %s146, 8
        %s148 = scalar_lea.vmem %s0, %s147
        %p149 = pneg %p38
        %p150 = pneg %p35
        %p151 = pneg %p59
        %p152 = pneg %p56
        %p153 = pneg %p80
        %p154 = pneg %p77
        %p155 = pneg %p106
        %p156 = pneg %p103
        %s157 = sand.u32 %s93, 1
        %s158 = scalar_lea.sflag [#allocation3], %s157
        %s159 = sand.u32 %s93, 1
        %s160 = smul.addr %s159, 8
        %s161 = scalar_lea.vmem [#allocation2], %s160
        %p162 = scmp.lt.s32.totalorder %s17, 1
        %s163 = scalar_select %p162, %s17, 1
        %s164 = smul.addr %s163, 8
        %s165 = scalar_lea.vmem %s0, %s164
        %v166 = vld [vmem:[%s165] sm:$0xff]
        %v167 = vld [vmem:[%s1] sm:$0xff]
        %v168 = vld [vmem:[%s1 + $0x8] sm:$0xff]
        %v169 = vld [vmem:[%s1 + $0x10] sm:$0xff]
        %v170 = vld [vmem:[%s1 + $0x18] sm:$0xff]
        %v171 = vld [vmem:[%s2] sm:$0x1]
        %v173 = vlaneseq
        %v174 = vshrl.u32 %v173, 7
        %v175 = vsub.s32 0, %v174
        %v176 = vrot.slane %v171, %v175
        %vm178 = vcmask 261120
        %v180 = vsel %vm178, %v166, 0
        %182 = vmatprep.subr.mxu0 0.0
        %183 = vmatpush1.msra.mxu0 0.0
        %184 = vmatprep.subr.mxu0 0.0
        %185 = vmatpush1.msra.mxu0 0.0
        %186 = vmatprep.subr.mxu0 0.0
        %187 = vmatpush1.msra.mxu0 0.0
        %188 = vmatprep.subr.mxu0 0.0
        %189 = vmatpush1.msra.mxu0 0.0
        %190 = vmatprep.subr.mxu0 0.0
        %191 = vmatpush1.msra.mxu0 0.0
        %192 = vmatprep.subr.mxu0 0.0
        %193 = vmatpush1.msra.mxu0 0.0
        %194 = vmatprep.subr.mxu0 0.0
        %195 = vmatpush1.msra.mxu0 0.0
        %196 = vmatprep.subr.mxu0 0.0
        %197 = vmatpush1.msra.mxu0 0.0
        %198 = vmatprep.subr.mxu0 0.0
        %199 = vmatpush1.msra.mxu0 0.0
        %200 = vmatprep.subr.mxu0 0.0
        %201 = vmatpush1.msra.mxu0 0.0
        %202 = vmatprep.subr.mxu0 0.0
        %203 = vmatpush1.msra.mxu0 0.0
        %204 = vmatprep.subr.mxu0 0.0
        %205 = vmatpush1.msra.mxu0 0.0
        %206 = vmatprep.subr.mxu0 0.0
        %207 = vmatpush1.msra.mxu0 %v170
        %208 = vmatprep.subr.mxu0 0.0
        %209 = vmatpush1.msra.mxu0 %v169
        %210 = vmatprep.subr.mxu0 0.0
        %211 = vmatpush1.msra.mxu0 %v168
        %212 = vmatprep.subr.mxu0 0.0
        %213 = vmatpush1.msra.mxu0 %v167
        %214 = vmatprep.subr.mxu0 0.0
        %215 = vmatpush2.msra.mxu0 0.0
        %216 = vmatprep.subr.mxu0 0.0
        %217 = vmatpush2.msra.mxu0 0.0
        %218 = vmatprep.subr.mxu0 0.0
        %219 = vmatpush2.msra.mxu0 0.0
        %220 = vmatprep.subr.mxu0 0.0
        %221 = vmatpush2.msra.mxu0 0.0
        %222 = vmatprep.subr.mxu0 0.0
        %223 = vmatpush2.msra.mxu0 0.0
        %224 = vmatprep.subr.mxu0 0.0
        %225 = vmatpush2.msra.mxu0 0.0
        %226 = vmatprep.subr.mxu0 0.0
        %227 = vmatpush2.msra.mxu0 0.0
        %228 = vmatprep.subr.mxu0 0.0
        %229 = vmatpush2.msra.mxu0 0.0
        %230 = vmatprep.subr.mxu0 0.0
        %231 = vmatpush2.msra.mxu0 0.0
        %232 = vmatprep.subr.mxu0 0.0
        %233 = vmatpush2.msra.mxu0 0.0
        %234 = vmatprep.subr.mxu0 0.0
        %235 = vmatpush2.msra.mxu0 0.0
        %236 = vmatprep.subr.mxu0 0.0
        %237 = vmatpush2.msra.mxu0 0.0
        %238 = vmatprep.subr.mxu0 0.0
        %239 = vmatpush2.msra.mxu0 0.0
        %240 = vmatprep.subr.mxu0 0.0
        %241 = vmatpush2.msra.mxu0 0.0
        %242 = vmatprep.subr.mxu0 0.0
        %243 = vmatpush2.msra.mxu0 0.0
        %244 = vmatprep.subr.mxu0 0.0
        %245 = vmatpush2.msra.mxu0 0.0
        %246 = vmatprep.mubr.f32.mxu0 0.0
        %247 = vmatmul.mubr.f32.gmra.mxu0 %v180
        %v248 = vpop.f32.mrf.mxu0
        %v249 = vadd.f32 %v176, %v248
        %v250 = vpop.f32.mrf.mxu0
        %251 = vdwg.mxu0
        %v252 = vmax.f32 %v249, 0.0
        %v253 = vand.u32 2147483647, %v249
        %v254 = vsub.f32 0.0, %v253
        %v255 = vmul.f32 %v254, 1.442695
        %v256 = vpow.pop %v255
        %v257 = vadd.f32 %v256, 1.0
        %v258 = vlog2.pop %v257
        %v259 = vmul.f32 %v258, 0.6931472
        %v260 = vmul.f32 -0.5, %v256
        %v261 = vadd.f32 %v260, 1.0
        %v262 = vmul.f32 %v261, %v256
        %v263 = vand.u32 2147483647, %v256
        %vm264 = vcmp.lt.f32.partialorder %v263, 0.0004427343
        %v265 = vsel %vm264, %v262, %v259
        %v266 = vadd.f32 %v252, %v265
        %v267 = vadd.f32 %v266, 1.0
        %vm268 = vcmask 130048
        %269 = vst.msk [vmem:[%s161] sm:$0xff] %vm268, %v267
        %s270 = sand.u32 %s93, 1
        %s271 = scalar_lea.sflag [#allocation3], %s270
        %s272 = sand.u32 %s93, 1
        %s273 = smul.addr %s272, 8
        %s274 = scalar_lea.vmem [#allocation2], %s273
        // Predicated region
        $region33: #{dirichlet_forward.1} parent=31 // pred_check
          %p275 = pneg %p103
        $region34: #{dirichlet_forward.1} parent=31 // pred_check_branch
          %277 = sbr.rel (%p275) target = $region36
        $region35: #{dirichlet_forward.1} parent=31 // pred_region
          %s279 = ssub.s32 128, 128
          %280 = vsyncadd %s271, %s279
          %s281 = smul.addr %s17, 128
          %s282 = scalar_lea.hbm %s3, %s281
          %s284 = sshll.u32 %s274, 4
          %s285 = int_to_ptr.vmem [resolvable:$true] %s284
          %287 = dma.vmem_to_hbm [thread:$0]  %s285, 128, %s282, %s271
        $region36: #{dirichlet_forward.1} parent=31 // pred_fallthru
          _
      $region32: #{dirichlet_forward.1} parent=5 // pred_fallthru
        _
      %p288 = scmp.le.s32.totalorder 2, %s12
      // Predicated region
      $region37: #{dirichlet_forward.1} parent=5 // pred_check
        %p289 = pneg %p288
      $region38: #{dirichlet_forward.1} parent=5 // pred_check_branch
        %291 = sbr.rel (%p289) target = $region40
      $region39: #{dirichlet_forward.1} parent=5 // pred_region
        %s292 = ssub.s32 %s12, 2
        // Predicated region
        $region41: #{dirichlet_forward.1} parent=39 // pred_check
          %p293 = pneg %p109
        $region42: #{dirichlet_forward.1} parent=39 // pred_check_branch
          %295 = sbr.rel (%p293) target = $region44
        $region43: #{dirichlet_forward.1} parent=39 // pred_region
          %s296 = sand.u32 %s94, 1
          %s297 = scalar_lea.sflag [#allocation3], %s296
          %s298 = sand.u32 %s94, 1
          %s299 = smul.addr %s298, 8
          %s300 = scalar_lea.vmem [#allocation2], %s299
          %301 = dma.done %s297, 128
        $region44: #{dirichlet_forward.1} parent=39 // pred_fallthru
          _
      $region40: #{dirichlet_forward.1} parent=5 // pred_fallthru
        _
    $region6: #{dirichlet_forward.1} parent=1 // loop_footer
      %s16 = sadd.s32 1, %s12
    $region7: #{dirichlet_forward.1} parent=1 // loop_footer_branch
      %11 = sbr.rel target = $region3
    $region8: #{dirichlet_forward.1} parent=1 // loop_exit
      _
    %302 = vsyncpa [#allocation3], 1
    %s303 = scalar_lea.sflag [#allocation3], 1
    %304 = vsyncpa %s303, 1

</llo_original>
